<compile_context>
chip_gen: v6e
topology: v6e:2x2x1
jax: 0.10.0
libtpu: 0.0.40
codegen_flags: <defaults>
</compile_context>

<pallas_src>
import functools

import jax
import jax.numpy as jnp
from jax.experimental import pallas as pl
from jax.experimental.pallas import tpu as pltpu

MARGIN = 1.0
EPS = 1e-6          # torch.nn.functional.pairwise_distance default eps
LANE = 128
SUBLANE = 8


def _round_up(x, m):
    return (x + m - 1) // m * m


# ----------------------------- Pallas kernel ------------------------------

def _secure_triplet_loss_kernel(a_ref, p1_ref, p2_ref, n1_ref, n2_ref, o_ref,
                                *, margin, eps, n_rows, n_cols):
    # a_ref / p*_ref / n*_ref: (Bp, Dp) f32, resident in VMEM, zero-padded
    # past (n_rows, n_cols).  o_ref: (1, 1) f32.
    a = a_ref[...]
    Bp, Dp = a.shape

    # eps is added to the difference only on the real (unpadded) columns so
    # padded lanes contribute exactly zero to the squared distance.  When
    # there is no column padding this is just a constant vreg of eps.
    if Dp == n_cols:
        eps_vec = jnp.full(a.shape, jnp.float32(eps))
    else:
        col = jax.lax.broadcasted_iota(jnp.int32, a.shape, 1)
        eps_vec = jnp.where(col < n_cols, jnp.float32(eps), jnp.float32(0.0))

    def dist(ref):
        d = a - ref[...] + eps_vec
        return jnp.sqrt(jnp.sum(d * d, axis=-1, keepdims=True))   # (Bp, 1)

    dp1 = dist(p1_ref)
    dp2 = dist(p2_ref)
    dn1 = dist(n1_ref)
    dn2 = dist(n2_ref)

    zero = jnp.float32(0.0)
    m = jnp.float32(margin)
    losses = (jnp.maximum(dp1 - dn1 + m, zero)
              + jnp.maximum(dp1 - dn2 + m, zero)
              + jnp.maximum(dp2 - dn1 + m, zero)
              + jnp.maximum(dp2 - dn2 + m, zero))                  # (Bp, 1)

    # Mask padded batch rows out of the mean (only if rows were padded).
    if Bp != n_rows:
        row = jax.lax.broadcasted_iota(jnp.int32, losses.shape, 0)
        losses = jnp.where(row < n_rows, losses, zero)

    o_ref[...] = jnp.sum(losses, keepdims=True) * jnp.float32(1.0 / n_rows)


# ------------------------------ JAX wrapper --------------------------------

def secure_triplet_loss(anchor, positive1, positive2, negative1, negative2,
                        margin=MARGIN):
    """Mirrors SecureTripletLoss.forward; returns a scalar jnp.float32."""
    B, D = anchor.shape
    Bp = _round_up(B, SUBLANE)
    Dp = _round_up(D, LANE)

    def prep(x):
        x = x.astype(jnp.float32)
        if Bp != B or Dp != D:
            x = jnp.pad(x, ((0, Bp - B), (0, Dp - D)))
        return x

    kernel = functools.partial(
        _secure_triplet_loss_kernel,
        margin=float(margin), eps=EPS, n_rows=B, n_cols=D)

    vmem_spec = pl.BlockSpec(memory_space=pltpu.MemorySpace.VMEM)
    out = pl.pallas_call(
        kernel,
        out_shape=jax.ShapeDtypeStruct((1, 1), jnp.float32),
        in_specs=[vmem_spec] * 5,
        out_specs=vmem_spec,
    )(prep(anchor), prep(positive1), prep(positive2),
      prep(negative1), prep(negative2))
    return out[0, 0]


# ------------------------------- Reference ---------------------------------

def ref_secure_triplet_loss(a, p1, p2, n1, n2, margin=MARGIN):
    """Pure-JAX/XLA reference with torch.pairwise_distance semantics."""
    def d(x, y):
        diff = x - y + EPS
        return jnp.sqrt(jnp.sum(diff * diff, axis=-1))
    dp1, dp2 = d(a, p1), d(a, p2)
    dn1, dn2 = d(a, n1), d(a, n2)
    losses = (jnp.maximum(dp1 - dn1 + margin, 0.0)
              + jnp.maximum(dp1 - dn2 + margin, 0.0)
              + jnp.maximum(dp2 - dn1 + margin, 0.0)
              + jnp.maximum(dp2 - dn2 + margin, 0.0))
    return jnp.mean(losses)


if __name__ == "__main__":
    rng = jax.random.PRNGKey(0)
    ka, kp1, kp2, kn1, kn2 = jax.random.split(rng, 5)

    B, D = 8, 100   # embedding dim matches the SecureHeartID model output (100)
    anchor = jax.random.normal(ka, (B, D), jnp.float32)
    positive1 = jax.random.normal(kp1, (B, D), jnp.float32)
    positive2 = jax.random.normal(kp2, (B, D), jnp.float32)
    negative1 = jax.random.normal(kn1, (B, D), jnp.float32)
    negative2 = jax.random.normal(kn2, (B, D), jnp.float32)

    loss_fn = jax.jit(secure_triplet_loss)
    loss = loss_fn(anchor, positive1, positive2, negative1, negative2)
    loss = jax.block_until_ready(loss)
    assert loss.shape == (), loss.shape

    ref = ref_secure_triplet_loss(anchor, positive1, positive2,
                                  negative1, negative2)
    max_err = float(jnp.abs(loss - ref))
    assert max_err < 5e-5, f"mismatch vs reference, abs err = {max_err}"

    print("KERNEL_OK")
</pallas_src>

<mosaic_0001>
module attributes {stable_mosaic.version = 11 : i64} {
  func.func @_secure_triplet_loss_kernel(%arg0: memref<8x128xf32, #tpu.memory_space<vmem>>, %arg1: memref<8x128xf32, #tpu.memory_space<vmem>>, %arg2: memref<8x128xf32, #tpu.memory_space<vmem>>, %arg3: memref<8x128xf32, #tpu.memory_space<vmem>>, %arg4: memref<8x128xf32, #tpu.memory_space<vmem>>, %arg5: memref<1x1xf32, #tpu.memory_space<vmem>>) attributes {dimension_semantics = [], scalar_prefetch = 0 : i64, scratch_operands = 0 : i64, tpu.core_type = #tpu.core_type<tc>} {
    %c0 = arith.constant 0 : index
    %c0_0 = arith.constant 0 : index
    %0 = vector.load %arg0[%c0, %c0_0] : memref<8x128xf32, #tpu.memory_space<vmem>>, vector<8x128xf32>
    %1 = tpu.iota {dimensions = array<i32: 1>} : vector<8x128xi32>
    %c100_i32 = arith.constant 100 : i32
    %2 = vector.broadcast %c100_i32 : i32 to vector<8x128xi32>
    %3 = arith.cmpi slt, %1, %2 : vector<8x128xi32>
    %cst = arith.constant 9.99999997E-7 : f32
    %cst_1 = arith.constant 0.000000e+00 : f32
    %4 = vector.broadcast %cst : f32 to vector<8x128xf32>
    %5 = vector.broadcast %cst_1 : f32 to vector<8x128xf32>
    %6 = arith.select %3, %4, %5 : vector<8x128xi1>, vector<8x128xf32>
    %c0_2 = arith.constant 0 : index
    %c0_3 = arith.constant 0 : index
    %7 = vector.load %arg1[%c0_2, %c0_3] : memref<8x128xf32, #tpu.memory_space<vmem>>, vector<8x128xf32>
    %8 = arith.subf %0, %7 : vector<8x128xf32>
    %9 = arith.addf %8, %6 : vector<8x128xf32>
    %10 = arith.mulf %9, %9 : vector<8x128xf32>
    %cst_4 = arith.constant dense<0.000000e+00> : vector<8xf32>
    %11 = vector.multi_reduction <add>, %10, %cst_4 [1] : vector<8x128xf32> to vector<8xf32>
    %12 = vector.shape_cast %11 : vector<8xf32> to vector<8x1xf32>
    %13 = math.sqrt %12 : vector<8x1xf32>
    %c0_5 = arith.constant 0 : index
    %c0_6 = arith.constant 0 : index
    %14 = vector.load %arg2[%c0_5, %c0_6] : memref<8x128xf32, #tpu.memory_space<vmem>>, vector<8x128xf32>
    %15 = arith.subf %0, %14 : vector<8x128xf32>
    %16 = arith.addf %15, %6 : vector<8x128xf32>
    %17 = arith.mulf %16, %16 : vector<8x128xf32>
    %cst_7 = arith.constant dense<0.000000e+00> : vector<8xf32>
    %18 = vector.multi_reduction <add>, %17, %cst_7 [1] : vector<8x128xf32> to vector<8xf32>
    %19 = vector.shape_cast %18 : vector<8xf32> to vector<8x1xf32>
    %20 = math.sqrt %19 : vector<8x1xf32>
    %c0_8 = arith.constant 0 : index
    %c0_9 = arith.constant 0 : index
    %21 = vector.load %arg3[%c0_8, %c0_9] : memref<8x128xf32, #tpu.memory_space<vmem>>, vector<8x128xf32>
    %22 = arith.subf %0, %21 : vector<8x128xf32>
    %23 = arith.addf %22, %6 : vector<8x128xf32>
    %24 = arith.mulf %23, %23 : vector<8x128xf32>
    %cst_10 = arith.constant dense<0.000000e+00> : vector<8xf32>
    %25 = vector.multi_reduction <add>, %24, %cst_10 [1] : vector<8x128xf32> to vector<8xf32>
    %26 = vector.shape_cast %25 : vector<8xf32> to vector<8x1xf32>
    %27 = math.sqrt %26 : vector<8x1xf32>
    %c0_11 = arith.constant 0 : index
    %c0_12 = arith.constant 0 : index
    %28 = vector.load %arg4[%c0_11, %c0_12] : memref<8x128xf32, #tpu.memory_space<vmem>>, vector<8x128xf32>
    %29 = arith.subf %0, %28 : vector<8x128xf32>
    %30 = arith.addf %29, %6 : vector<8x128xf32>
    %31 = arith.mulf %30, %30 : vector<8x128xf32>
    %cst_13 = arith.constant dense<0.000000e+00> : vector<8xf32>
    %32 = vector.multi_reduction <add>, %31, %cst_13 [1] : vector<8x128xf32> to vector<8xf32>
    %33 = vector.shape_cast %32 : vector<8xf32> to vector<8x1xf32>
    %34 = math.sqrt %33 : vector<8x1xf32>
    %35 = arith.subf %13, %27 : vector<8x1xf32>
    %cst_14 = arith.constant 1.000000e+00 : f32
    %36 = vector.broadcast %cst_14 : f32 to vector<8x1xf32>
    %37 = arith.addf %35, %36 : vector<8x1xf32>
    %cst_15 = arith.constant 0.000000e+00 : f32
    %38 = vector.broadcast %cst_15 : f32 to vector<8x1xf32>
    %39 = arith.maximumf %37, %38 : vector<8x1xf32>
    %40 = arith.subf %13, %34 : vector<8x1xf32>
    %cst_16 = arith.constant 1.000000e+00 : f32
    %41 = vector.broadcast %cst_16 : f32 to vector<8x1xf32>
    %42 = arith.addf %40, %41 : vector<8x1xf32>
    %cst_17 = arith.constant 0.000000e+00 : f32
    %43 = vector.broadcast %cst_17 : f32 to vector<8x1xf32>
    %44 = arith.maximumf %42, %43 : vector<8x1xf32>
    %45 = arith.addf %39, %44 : vector<8x1xf32>
    %46 = arith.subf %20, %27 : vector<8x1xf32>
    %cst_18 = arith.constant 1.000000e+00 : f32
    %47 = vector.broadcast %cst_18 : f32 to vector<8x1xf32>
    %48 = arith.addf %46, %47 : vector<8x1xf32>
    %cst_19 = arith.constant 0.000000e+00 : f32
    %49 = vector.broadcast %cst_19 : f32 to vector<8x1xf32>
    %50 = arith.maximumf %48, %49 : vector<8x1xf32>
    %51 = arith.addf %45, %50 : vector<8x1xf32>
    %52 = arith.subf %20, %34 : vector<8x1xf32>
    %cst_20 = arith.constant 1.000000e+00 : f32
    %53 = vector.broadcast %cst_20 : f32 to vector<8x1xf32>
    %54 = arith.addf %52, %53 : vector<8x1xf32>
    %cst_21 = arith.constant 0.000000e+00 : f32
    %55 = vector.broadcast %cst_21 : f32 to vector<8x1xf32>
    %56 = arith.maximumf %54, %55 : vector<8x1xf32>
    %57 = arith.addf %51, %56 : vector<8x1xf32>
    %58 = vector.shape_cast %57 : vector<8x1xf32> to vector<1x8x1xf32>
    %cst_22 = arith.constant dense<0.000000e+00> : vector<1xf32>
    %59 = vector.multi_reduction <add>, %58, %cst_22 [1, 2] : vector<1x8x1xf32> to vector<1xf32>
    %60 = vector.shape_cast %59 : vector<1xf32> to vector<1x1x1xf32>
    %61 = vector.extract %60[0, 0, 0] : f32 from vector<1x1x1xf32>
    %62 = vector.broadcast %61 : f32 to vector<1x1xf32>
    %cst_23 = arith.constant 1.250000e-01 : f32
    %63 = vector.broadcast %cst_23 : f32 to vector<1x1xf32>
    %64 = arith.mulf %62, %63 : vector<1x1xf32>
    %c0_24 = arith.constant 0 : index
    %c0_25 = arith.constant 0 : index
    %65 = vector.load %arg5[%c0_24, %c0_25] : memref<1x1xf32, #tpu.memory_space<vmem>>, vector<1x1xf32>
    tpu.vector_store %arg5[%c0_24, %c0_25], %64 {strides = array<i32>} : memref<1x1xf32, #tpu.memory_space<vmem>>, vector<1x1xf32>,
    return
  }
}

</mosaic_0001>

<llo_original>
// kernel: secure_triplet_loss.1
$region0: #{secure_triplet_loss.1}
  #allocation0 [shape = 'u32[]', space=smem, size = 0x4, offset = 0x4, fixed_abs, tag = 'smem constant byte address 0x4 - core index']
  #allocation1 [shape = 'u32[144,128]{1,0:T(1,128)}', space=vmem, size = 0x12000, scoped, tag = 'internal scratch']
  %s0 = inlined_call_operand.vmem [shape: f32[8,128], index: 0, kind: input, shape index: {}]
  %s1 = inlined_call_operand.vmem [shape: f32[8,128], index: 1, kind: input, shape index: {}]
  %s2 = inlined_call_operand.vmem [shape: f32[8,128], index: 2, kind: input, shape index: {}]
  %s3 = inlined_call_operand.vmem [shape: f32[8,128], index: 3, kind: input, shape index: {}]
  %s4 = inlined_call_operand.vmem [shape: f32[8,128], index: 4, kind: input, shape index: {}]
  %s5 = inlined_call_operand.hbm [shape: f32[1,1], index: 5, kind: output, shape index: {}]
  %s6 = sld [smem:[#allocation0]]
  $region30: #{secure_triplet_loss.1} parent=0
    _
  %s8 = ssub.s32 1, %s6
  %s9 = scalar_select 0, %s8, %s6
  $region1: #{secure_triplet_loss.1} parent=0
    #allocation2 [shape = 'u8[512]{0}', space=vmem, size = 0x400, scoped, tag = 'output window, operand 0, single buffered']
    #allocation3 [shape = 's32[1]{0}', space=sflag, size = 0x4, scoped, tag = 'scoped memory for secure_triplet_loss.1']
    %10 = vsyncpa [#allocation3], 0
    // Predicated region
    $region2: #{secure_triplet_loss.1} parent=1 // pred_check
      _
    $region3: #{secure_triplet_loss.1} parent=1 // pred_check_branch
      %12 = sbr.rel (0) target = $region5
    $region4: #{secure_triplet_loss.1} parent=1 // pred_region
      _
    $region5: #{secure_triplet_loss.1} parent=1 // pred_fallthru
      _
    // Predicated region
    $region6: #{secure_triplet_loss.1} parent=1 // pred_check
      _
    $region7: #{secure_triplet_loss.1} parent=1 // pred_check_branch
      %14 = sbr.rel (0) target = $region9
    $region8: #{secure_triplet_loss.1} parent=1 // pred_region
      _
    $region9: #{secure_triplet_loss.1} parent=1 // pred_fallthru
      _
    // Predicated region
    $region10: #{secure_triplet_loss.1} parent=1 // pred_check
      _
    $region11: #{secure_triplet_loss.1} parent=1 // pred_check_branch
      %16 = sbr.rel (0) target = $region13
    $region12: #{secure_triplet_loss.1} parent=1 // pred_region
      _
    $region13: #{secure_triplet_loss.1} parent=1 // pred_fallthru
      _
    // Predicated region
    $region14: #{secure_triplet_loss.1} parent=1 // pred_check
      _
    $region15: #{secure_triplet_loss.1} parent=1 // pred_check_branch
      %18 = sbr.rel (0) target = $region17
    $region16: #{secure_triplet_loss.1} parent=1 // pred_region
      _
    $region17: #{secure_triplet_loss.1} parent=1 // pred_fallthru
      _
    // Predicated region
    $region18: #{secure_triplet_loss.1} parent=1 // pred_check
      _
    $region19: #{secure_triplet_loss.1} parent=1 // pred_check_branch
      %20 = sbr.rel (0) target = $region21
    $region20: #{secure_triplet_loss.1} parent=1 // pred_region
      _
    $region21: #{secure_triplet_loss.1} parent=1 // pred_fallthru
      _
    %v21 = vld [vmem:[%s0] sm:$0xff]
    %v22 = vlaneseq
    %v23 = vand.u32 %v22, 127
    %vm24 = vcmp.lt.s32.totalorder %v23, 100
    %v25 = vsel %vm24, 1e-06, 0.0
    %v26 = vld [vmem:[%s1] sm:$0xff]
    %v27 = vsub.f32 %v21, %v26
    %v28 = vadd.f32 %v27, %v25
    %v29 = vmul.f32 %v28, %v28
    %30 = vadd.xlane.f32.xlu0 %v29
    %v31 = vpop.xlane.xlu0 %30
    %v32 = vrsqrt.pop %v31
    %v33 = vmul.f32 %v31, %v32
    %vm34 = vcmp.eq.f32.partialorder %v31, inf
    %v35 = vsel %vm34, %v31, %v33
    %vm36 = vcmp.eq.f32.partialorder %v31, 0.0
    %v37 = vand.u32 %v31, 2147483648
    %v38 = vsel %vm36, %v37, %v35
    %v39 = vld [vmem:[%s2] sm:$0xff]
    %v40 = vsub.f32 %v21, %v39
    %v41 = vadd.f32 %v40, %v25
    %v42 = vmul.f32 %v41, %v41
    %43 = vadd.xlane.f32.xlu0 %v42
    %v44 = vpop.xlane.xlu0 %43
    %v45 = vrsqrt.pop %v44
    %v46 = vmul.f32 %v44, %v45
    %vm47 = vcmp.eq.f32.partialorder %v44, inf
    %v48 = vsel %vm47, %v44, %v46
    %vm49 = vcmp.eq.f32.partialorder %v44, 0.0
    %v50 = vand.u32 %v44, 2147483648
    %v51 = vsel %vm49, %v50, %v48
    %v52 = vld [vmem:[%s3] sm:$0xff]
    %v53 = vsub.f32 %v21, %v52
    %v54 = vadd.f32 %v53, %v25
    %v55 = vmul.f32 %v54, %v54
    %56 = vadd.xlane.f32.xlu0 %v55
    %v57 = vpop.xlane.xlu0 %56
    %v58 = vrsqrt.pop %v57
    %v59 = vmul.f32 %v57, %v58
    %vm60 = vcmp.eq.f32.partialorder %v57, inf
    %v61 = vsel %vm60, %v57, %v59
    %vm62 = vcmp.eq.f32.partialorder %v57, 0.0
    %v63 = vand.u32 %v57, 2147483648
    %v64 = vsel %vm62, %v63, %v61
    %v65 = vld [vmem:[%s4] sm:$0xff]
    %v66 = vsub.f32 %v21, %v65
    %v67 = vadd.f32 %v66, %v25
    %v68 = vmul.f32 %v67, %v67
    %69 = vadd.xlane.f32.xlu0 %v68
    %v70 = vpop.xlane.xlu0 %69
    %v71 = vrsqrt.pop %v70
    %v72 = vmul.f32 %v70, %v71
    %vm73 = vcmp.eq.f32.partialorder %v70, inf
    %v74 = vsel %vm73, %v70, %v72
    %vm75 = vcmp.eq.f32.partialorder %v70, 0.0
    %v76 = vand.u32 %v70, 2147483648
    %v77 = vsel %vm75, %v76, %v74
    %v78 = vsub.f32 %v38, %v64
    %v79 = vadd.f32 %v78, 1.0
    %v80 = vmax.f32 %v79, 0.0
    %v81 = vsub.f32 %v38, %v77
    %v82 = vadd.f32 %v81, 1.0
    %v83 = vmax.f32 %v82, 0.0
    %v84 = vadd.f32 %v80, %v83
    %v85 = vsub.f32 %v51, %v64
    %v86 = vadd.f32 %v85, 1.0
    %v87 = vmax.f32 %v86, 0.0
    %v88 = vadd.f32 %v84, %v87
    %v89 = vsub.f32 %v51, %v77
    %v90 = vadd.f32 %v89, 1.0
    %v91 = vmax.f32 %v90, 0.0
    %v92 = vadd.f32 %v88, %v91
    %vm93 = vcmask 7168
    %v94 = vsel %vm93, %v92, 0.0
    %95 = vadd.xlane.f32.xlu0 %v94
    %v96 = vpop.xlane.xlu0 %95
    %v97 = vrot.slane %v96, 4
    %v98 = vadd.f32 %v96, %v97
    %v99 = vrot.slane %v98, 2
    %v100 = vadd.f32 %v98, %v99
    %v101 = vrot.slane %v100, 1
    %v102 = vadd.f32 %v100, %v101
    %s103 = vtos %v102
    %v104 = vstv %s103
    %v105 = vmul.f32 %v104, 0.125
    %vm106 = vcmask 0
    %107 = vst.msk [vmem:[#allocation2] sm:$0x1] %vm106, %v105
    // Predicated region
    $region22: #{secure_triplet_loss.1} parent=1 // pred_check
      _
    $region23: #{secure_triplet_loss.1} parent=1 // pred_check_branch
      %109 = sbr.rel (0) target = $region25
    $region24: #{secure_triplet_loss.1} parent=1 // pred_region
      %s111 = ssub.s32 16, 16
      %112 = vsyncadd [#allocation3], %s111
      %s114 = sshll.u32 [#allocation2], 4
      %s115 = int_to_ptr.vmem [resolvable:$true] %s114
      %117 = dma.vmem_to_hbm [thread:$0]  %s115, 16, %s5, [#allocation3]
    $region25: #{secure_triplet_loss.1} parent=1 // pred_fallthru
      _
    // Predicated region
    $region26: #{secure_triplet_loss.1} parent=1 // pred_check
      _
    $region27: #{secure_triplet_loss.1} parent=1 // pred_check_branch
      %119 = sbr.rel (0) target = $region29
    $region28: #{secure_triplet_loss.1} parent=1 // pred_region
      %120 = dma.done [#allocation3], 16
    $region29: #{secure_triplet_loss.1} parent=1 // pred_fallthru
      _
    %121 = vsyncpa [#allocation3], 1

</llo_original>
